<compile_context>
chip_gen: v5e
topology: v5e:2x2
jax: 0.10.0
libtpu: 0.0.40
codegen_flags: <defaults>
</compile_context>

<pallas_src>
import functools

import jax
import jax.numpy as jnp
from jax import lax
from jax.experimental import pallas as pl
from jax.experimental.pallas import tpu as pltpu

LANE = 128
SUBLANE = 8


def _round_up(x, m):
    return ((x + m - 1) // m) * m


def drqn_kernel(x_ref, wih_ref, whh_ref, blstm_ref,
                w1_ref, b1_ref, w2_ref, b2_ref,
                h0_ref, c0_ref,
                y_ref, hn_ref, cn_ref,
                hall_scr):
    """Single-invocation kernel (no grid).

    x_ref:    [T*Bp, s_dim]  time-major rows (row = t*Bp + b), Bp multiple of 8
    wih_ref:  [s_dim, 4H]    whh_ref: [H, 4H]   blstm_ref: [1, 4H]
              gate column order (i, f, o, g); i/f/o columns carry a folded 0.5
              so sigmoid(x) = 0.5*tanh(x/2) + 0.5 needs one tanh per step.
    w1_ref:   [H, H_PAD]     b1_ref:  [1, H_PAD]
    w2_ref:   [H_PAD, A_PAD] b2_ref:  [1, A_PAD]
    h0/c0:    [Bp, H]        y_ref:   [T*Bp, A_PAD]   hn/cn: [Bp, H]
    hall_scr: [T*Bp, H]      per-step hidden states (input to the MLP head)
    """
    BP, H = h0_ref.shape
    TB = x_ref.shape[0]
    T = TB // BP

    # ---- Prologue: hoisted input projection, one matmul for all timesteps ----
    gx = (jnp.dot(x_ref[...], wih_ref[...], preferred_element_type=jnp.float32)
          + blstm_ref[...])                               # [T*Bp, 4H]

    whh = whh_ref[...]                                    # [H, 4H] (read once)
    h = h0_ref[...]                                       # [Bp, H]
    c = c0_ref[...]                                       # [Bp, H]

    # ---- Recurrence: fully unrolled; only h @ W_hh + 2 tanh on serial path ---
    # TODO(synk): keep W_hh staged in the MXU across steps via
    # pltpu.matmul_push_rhs / matmul_acc_lhs / matmul_pop once that path is
    # validated; jnp.dot re-streams the tiny [H, 4H] RHS every step.
    # Gate math stays in f32 (no bf16 VPU/EUP on v5e).
    for t in range(T):
        gates = (jnp.dot(h, whh, preferred_element_type=jnp.float32)
                 + gx[t * BP:(t + 1) * BP, :])            # [Bp, 4H], (8,128) tile
        t_all = jnp.tanh(gates)                           # single EUP pass
        sig = 0.5 * t_all + 0.5                           # sigmoid for i/f/o cols
        i_g = sig[:, 0 * H:1 * H]
        f_g = sig[:, 1 * H:2 * H]
        o_g = sig[:, 2 * H:3 * H]
        g_g = t_all[:, 3 * H:4 * H]
        c = f_g * c + i_g * g_g
        h = o_g * jnp.tanh(c)
        hall_scr[t * BP:(t + 1) * BP, :] = h              # sublane-aligned store

    hn_ref[...] = h
    cn_ref[...] = c

    # ---- Epilogue: MLP head over all timesteps at once, lane-dense slabs -----
    feats = hall_scr[...]                                 # [T*Bp, H]
    z = jnp.maximum(
        jnp.dot(feats, w1_ref[...], preferred_element_type=jnp.float32)
        + b1_ref[...], 0.0)                               # [T*Bp, H_PAD]
    y_ref[...] = (jnp.dot(z, w2_ref[...], preferred_element_type=jnp.float32)
                  + b2_ref[...])                          # unmasked full-tile store


def drq_net_forward(s, params, h0=None, c0=None, return_hidden=False):
    """s: [B, T, s_dim] (batch_first, like the PyTorch module). Returns [B, T, a_num]."""
    B, T, s_dim = s.shape
    H = params["W_hh"].shape[1]              # W_hh: [4H, H] in PyTorch layout
    a_num = params["W2"].shape[0]            # W2:   [a_num, H] in PyTorch layout
    a_pad = _round_up(a_num, LANE)           # lane-dense output width
    h_pad = _round_up(H, LANE)               # lane-dense MLP intermediate width
    b_pad = _round_up(B, SUBLANE)            # sublane-aligned batch

    if h0 is None:
        h0 = jnp.zeros((1, B, H), jnp.float32)
    if c0 is None:
        c0 = jnp.zeros((1, B, H), jnp.float32)

    # --- LSTM weights: transpose, fold bias, reorder gates (i,f,g,o)->(i,f,o,g)
    #     and fold the 0.5 of sigmoid(x)=0.5*tanh(x/2)+0.5 into i/f/o columns. ---
    wih = params["W_ih"].T.astype(jnp.float32)                         # [s_dim, 4H]
    whh = params["W_hh"].T.astype(jnp.float32)                         # [H, 4H]
    b_lstm = (params["b_ih"] + params["b_hh"]).reshape(1, -1).astype(jnp.float32)

    def reorder_and_scale(w):
        i, f, g, o = (w[..., 0 * H:1 * H], w[..., 1 * H:2 * H],
                      w[..., 2 * H:3 * H], w[..., 3 * H:4 * H])
        return jnp.concatenate([0.5 * i, 0.5 * f, 0.5 * o, g], axis=-1)

    wih = reorder_and_scale(wih)
    whh = reorder_and_scale(whh)
    b_lstm = reorder_and_scale(b_lstm)

    # --- MLP head weights: zero-pad to lane-dense widths. ---
    w1 = params["W1"].T.astype(jnp.float32)                            # [H, H]
    b1 = params["b1"].reshape(1, -1).astype(jnp.float32)               # [1, H]
    w2 = params["W2"].T.astype(jnp.float32)                            # [H, a_num]
    b2 = params["b2"].reshape(1, -1).astype(jnp.float32)               # [1, a_num]
    w1p = jnp.zeros((H, h_pad), jnp.float32).at[:, :H].set(w1)         # [H, H_PAD]
    b1p = jnp.zeros((1, h_pad), jnp.float32).at[:, :H].set(b1)         # [1, H_PAD]
    w2p = jnp.zeros((h_pad, a_pad), jnp.float32).at[:H, :a_num].set(w2)  # [H_PAD, A_PAD]
    b2p = jnp.zeros((1, a_pad), jnp.float32).at[:, :a_num].set(b2)     # [1, A_PAD]

    # --- Time-major, batch-padded rows: row index = t*b_pad + b (pad rows = 0). ---
    x_tm = jnp.transpose(s, (1, 0, 2)).astype(jnp.float32)             # [T, B, s_dim]
    x_tm = jnp.pad(x_tm, ((0, 0), (0, b_pad - B), (0, 0)))             # [T, Bp, s_dim]
    x2d = x_tm.reshape(T * b_pad, s_dim)
    h0p = jnp.pad(h0[0].astype(jnp.float32), ((0, b_pad - B), (0, 0)))  # [Bp, H]
    c0p = jnp.pad(c0[0].astype(jnp.float32), ((0, b_pad - B), (0, 0)))  # [Bp, H]

    vmem = pl.BlockSpec(memory_space=pltpu.MemorySpace.VMEM)

    # TODO(synk): for large B, add a batch grid axis ("parallel") so the
    # independent per-batch recurrences shard across v7x's two TensorCores and
    # set vmem_limit_bytes; at B=2 (Bp=8) it buys nothing.
    y2d, hn, cn = pl.pallas_call(
        drqn_kernel,
        out_shape=(
            jax.ShapeDtypeStruct((T * b_pad, a_pad), jnp.float32),
            jax.ShapeDtypeStruct((b_pad, H), jnp.float32),
            jax.ShapeDtypeStruct((b_pad, H), jnp.float32),
        ),
        in_specs=[vmem] * 10,
        out_specs=(vmem, vmem, vmem),
        scratch_shapes=[
            pltpu.VMEM((T * b_pad, H), jnp.float32),   # all per-step hidden states
        ],
        input_output_aliases={8: 1, 9: 2},             # h0 -> hn, c0 -> cn
    )(x2d, wih, whh, b_lstm, w1p, b1p, w2p, b2p, h0p, c0p)

    # Back to batch-first and strip batch/lane padding.
    output = jnp.transpose(
        y2d.reshape(T, b_pad, a_pad)[:, :B, :a_num], (1, 0, 2))        # [B, T, a_num]
    if return_hidden:
        return output, hn[:B][None], cn[:B][None]      # hn/cn: [num_layers=1, B, H]
    return output


def init_params(key, s_dim, hidden, a_num):
    """Deterministic init mimicking PyTorch's uniform(-1/sqrt(fan), 1/sqrt(fan))."""
    ks = jax.random.split(key, 8)
    k_lstm = 1.0 / jnp.sqrt(hidden)
    k_fc1 = 1.0 / jnp.sqrt(hidden)
    k_fc2 = 1.0 / jnp.sqrt(hidden)
    u = lambda k, shp, lim: jax.random.uniform(k, shp, jnp.float32, -lim, lim)
    return {
        "W_ih": u(ks[0], (4 * hidden, s_dim), k_lstm),
        "W_hh": u(ks[1], (4 * hidden, hidden), k_lstm),
        "b_ih": u(ks[2], (4 * hidden,), k_lstm),
        "b_hh": u(ks[3], (4 * hidden,), k_lstm),
        "W1": u(ks[4], (hidden, hidden), k_fc1),
        "b1": u(ks[5], (hidden,), k_fc1),
        "W2": u(ks[6], (a_num, hidden), k_fc2),
        "b2": u(ks[7], (a_num,), k_fc2),
    }


def drq_net_reference(s, params):
    """Pure-JAX reference (lax.scan LSTM, exact sigmoid) for correctness checking."""
    B, T, _ = s.shape
    H = params["W_hh"].shape[1]
    wih, whh = params["W_ih"].T, params["W_hh"].T
    b = params["b_ih"] + params["b_hh"]

    def cell(carry, x_t):
        h, c = carry
        gates = x_t @ wih + h @ whh + b
        i = jax.nn.sigmoid(gates[:, 0 * H:1 * H])
        f = jax.nn.sigmoid(gates[:, 1 * H:2 * H])
        g = jnp.tanh(gates[:, 2 * H:3 * H])
        o = jax.nn.sigmoid(gates[:, 3 * H:4 * H])
        c = f * c + i * g
        h = o * jnp.tanh(c)
        return (h, c), h

    h0 = jnp.zeros((B, H), jnp.float32)
    c0 = jnp.zeros((B, H), jnp.float32)
    (hn, cn), feats = lax.scan(cell, (h0, c0), jnp.transpose(s, (1, 0, 2)))
    feats = jnp.transpose(feats, (1, 0, 2))                       # [B, T, H]
    z = jnp.maximum(feats @ params["W1"].T + params["b1"], 0.0)
    out = z @ params["W2"].T + params["b2"]
    return out, hn, cn


if __name__ == "__main__":
    B, T, S_DIM, HIDDEN, A_NUM = 2, 8, 16, 32, 4

    key = jax.random.PRNGKey(0)
    k_param, k_input = jax.random.split(key)
    params = init_params(k_param, S_DIM, HIDDEN, A_NUM)
    s = jax.random.normal(k_input, (B, T, S_DIM), jnp.float32)

    fwd = jax.jit(functools.partial(drq_net_forward, return_hidden=True))
    out, hn, cn = fwd(s, params)
    jax.block_until_ready((out, hn, cn))

    assert out.shape == (B, T, A_NUM)
    assert hn.shape == (1, B, HIDDEN) and cn.shape == (1, B, HIDDEN)

    ref_out, ref_hn, ref_cn = drq_net_reference(s, params)
    assert jnp.allclose(out, ref_out, atol=1e-3, rtol=1e-3), "output mismatch"
    assert jnp.allclose(hn[0], ref_hn, atol=1e-3, rtol=1e-3), "hn mismatch"
    assert jnp.allclose(cn[0], ref_cn, atol=1e-3, rtol=1e-3), "cn mismatch"

    print("KERNEL_OK")
</pallas_src>

<mosaic_0001>
module attributes {stable_mosaic.version = 11 : i64} {
  func.func @drqn_kernel(%arg0: memref<64x16xf32, #tpu.memory_space<vmem>>, %arg1: memref<16x128xf32, #tpu.memory_space<vmem>>, %arg2: memref<32x128xf32, #tpu.memory_space<vmem>>, %arg3: memref<1x128xf32, #tpu.memory_space<vmem>>, %arg4: memref<32x128xf32, #tpu.memory_space<vmem>>, %arg5: memref<1x128xf32, #tpu.memory_space<vmem>>, %arg6: memref<128x128xf32, #tpu.memory_space<vmem>>, %arg7: memref<1x128xf32, #tpu.memory_space<vmem>>, %arg8: memref<8x32xf32, #tpu.memory_space<vmem>>, %arg9: memref<8x32xf32, #tpu.memory_space<vmem>>, %arg10: memref<64x128xf32, #tpu.memory_space<vmem>>, %arg11: memref<8x32xf32, #tpu.memory_space<vmem>>, %arg12: memref<8x32xf32, #tpu.memory_space<vmem>>, %arg13: memref<64x32xf32, #tpu.memory_space<vmem>>) attributes {dimension_semantics = [], scalar_prefetch = 0 : i64, scratch_operands = 1 : i64, tpu.core_type = #tpu.core_type<tc>} {
    %c0 = arith.constant 0 : index
    %c0_0 = arith.constant 0 : index
    %0 = vector.load %arg0[%c0, %c0_0] : memref<64x16xf32, #tpu.memory_space<vmem>>, vector<64x16xf32>
    %c0_1 = arith.constant 0 : index
    %c0_2 = arith.constant 0 : index
    %1 = vector.load %arg1[%c0_1, %c0_2] : memref<16x128xf32, #tpu.memory_space<vmem>>, vector<16x128xf32>
    %cst = arith.constant dense<0.000000e+00> : vector<64x128xf32>
    %2 = tpu.matmul %0, %1, %cst {dimension_numbers = #tpu.dot_dimension_numbers<[1], [0], [0], [1], [0, 0, 1, 1], [], []>} : vector<64x16xf32>, vector<16x128xf32>, vector<64x128xf32> -> vector<64x128xf32>
    %c0_3 = arith.constant 0 : index
    %c0_4 = arith.constant 0 : index
    %3 = vector.load %arg3[%c0_3, %c0_4] : memref<1x128xf32, #tpu.memory_space<vmem>>, vector<1x128xf32>
    %4 = vector.broadcast %3 : vector<1x128xf32> to vector<64x128xf32>
    %5 = arith.addf %2, %4 : vector<64x128xf32>
    %c0_5 = arith.constant 0 : index
    %c0_6 = arith.constant 0 : index
    %6 = vector.load %arg2[%c0_5, %c0_6] : memref<32x128xf32, #tpu.memory_space<vmem>>, vector<32x128xf32>
    %c0_7 = arith.constant 0 : index
    %c0_8 = arith.constant 0 : index
    %7 = vector.load %arg8[%c0_7, %c0_8] : memref<8x32xf32, #tpu.memory_space<vmem>>, vector<8x32xf32>
    %c0_9 = arith.constant 0 : index
    %c0_10 = arith.constant 0 : index
    %8 = vector.load %arg9[%c0_9, %c0_10] : memref<8x32xf32, #tpu.memory_space<vmem>>, vector<8x32xf32>
    %cst_11 = arith.constant dense<0.000000e+00> : vector<8x128xf32>
    %9 = tpu.matmul %7, %6, %cst_11 {dimension_numbers = #tpu.dot_dimension_numbers<[1], [0], [0], [1], [0, 0, 1, 1], [], []>} : vector<8x32xf32>, vector<32x128xf32>, vector<8x128xf32> -> vector<8x128xf32>
    %10 = vector.extract_strided_slice %5 {offsets = [0, 0], sizes = [8, 128], strides = [1, 1]} : vector<64x128xf32> to vector<8x128xf32>
    %11 = arith.addf %9, %10 : vector<8x128xf32>
    %12 = math.tanh %11 : vector<8x128xf32>
    %cst_12 = arith.constant 5.000000e-01 : f32
    %13 = vector.broadcast %cst_12 : f32 to vector<8x128xf32>
    %14 = arith.mulf %13, %12 : vector<8x128xf32>
    %cst_13 = arith.constant 5.000000e-01 : f32
    %15 = vector.broadcast %cst_13 : f32 to vector<8x128xf32>
    %16 = arith.addf %14, %15 : vector<8x128xf32>
    %17 = vector.extract_strided_slice %16 {offsets = [0, 0], sizes = [8, 32], strides = [1, 1]} : vector<8x128xf32> to vector<8x32xf32>
    %18 = vector.extract_strided_slice %16 {offsets = [0, 32], sizes = [8, 32], strides = [1, 1]} : vector<8x128xf32> to vector<8x32xf32>
    %19 = vector.extract_strided_slice %16 {offsets = [0, 64], sizes = [8, 32], strides = [1, 1]} : vector<8x128xf32> to vector<8x32xf32>
    %20 = vector.extract_strided_slice %12 {offsets = [0, 96], sizes = [8, 32], strides = [1, 1]} : vector<8x128xf32> to vector<8x32xf32>
    %21 = arith.mulf %18, %8 : vector<8x32xf32>
    %22 = arith.mulf %17, %20 : vector<8x32xf32>
    %23 = arith.addf %21, %22 : vector<8x32xf32>
    %24 = math.tanh %23 : vector<8x32xf32>
    %25 = arith.mulf %19, %24 : vector<8x32xf32>
    %c0_14 = arith.constant 0 : index
    %c0_15 = arith.constant 0 : index
    %26 = vector.load %arg13[%c0_14, %c0_15] : memref<64x32xf32, #tpu.memory_space<vmem>>, vector<8x32xf32>
    tpu.vector_store %arg13[%c0_14, %c0_15], %25 {strides = array<i32>} : memref<64x32xf32, #tpu.memory_space<vmem>>, vector<8x32xf32>,
    %cst_16 = arith.constant dense<0.000000e+00> : vector<8x128xf32>
    %27 = tpu.matmul %25, %6, %cst_16 {dimension_numbers = #tpu.dot_dimension_numbers<[1], [0], [0], [1], [0, 0, 1, 1], [], []>} : vector<8x32xf32>, vector<32x128xf32>, vector<8x128xf32> -> vector<8x128xf32>
    %28 = vector.extract_strided_slice %5 {offsets = [8, 0], sizes = [8, 128], strides = [1, 1]} : vector<64x128xf32> to vector<8x128xf32>
    %29 = arith.addf %27, %28 : vector<8x128xf32>
    %30 = math.tanh %29 : vector<8x128xf32>
    %cst_17 = arith.constant 5.000000e-01 : f32
    %31 = vector.broadcast %cst_17 : f32 to vector<8x128xf32>
    %32 = arith.mulf %31, %30 : vector<8x128xf32>
    %cst_18 = arith.constant 5.000000e-01 : f32
    %33 = vector.broadcast %cst_18 : f32 to vector<8x128xf32>
    %34 = arith.addf %32, %33 : vector<8x128xf32>
    %35 = vector.extract_strided_slice %34 {offsets = [0, 0], sizes = [8, 32], strides = [1, 1]} : vector<8x128xf32> to vector<8x32xf32>
    %36 = vector.extract_strided_slice %34 {offsets = [0, 32], sizes = [8, 32], strides = [1, 1]} : vector<8x128xf32> to vector<8x32xf32>
    %37 = vector.extract_strided_slice %34 {offsets = [0, 64], sizes = [8, 32], strides = [1, 1]} : vector<8x128xf32> to vector<8x32xf32>
    %38 = vector.extract_strided_slice %30 {offsets = [0, 96], sizes = [8, 32], strides = [1, 1]} : vector<8x128xf32> to vector<8x32xf32>
    %39 = arith.mulf %36, %23 : vector<8x32xf32>
    %40 = arith.mulf %35, %38 : vector<8x32xf32>
    %41 = arith.addf %39, %40 : vector<8x32xf32>
    %42 = math.tanh %41 : vector<8x32xf32>
    %43 = arith.mulf %37, %42 : vector<8x32xf32>
    %c8 = arith.constant 8 : index
    %c0_19 = arith.constant 0 : index
    %44 = vector.load %arg13[%c8, %c0_19] : memref<64x32xf32, #tpu.memory_space<vmem>>, vector<8x32xf32>
    tpu.vector_store %arg13[%c8, %c0_19], %43 {strides = array<i32>} : memref<64x32xf32, #tpu.memory_space<vmem>>, vector<8x32xf32>,
    %cst_20 = arith.constant dense<0.000000e+00> : vector<8x128xf32>
    %45 = tpu.matmul %43, %6, %cst_20 {dimension_numbers = #tpu.dot_dimension_numbers<[1], [0], [0], [1], [0, 0, 1, 1], [], []>} : vector<8x32xf32>, vector<32x128xf32>, vector<8x128xf32> -> vector<8x128xf32>
    %46 = vector.extract_strided_slice %5 {offsets = [16, 0], sizes = [8, 128], strides = [1, 1]} : vector<64x128xf32> to vector<8x128xf32>
    %47 = arith.addf %45, %46 : vector<8x128xf32>
    %48 = math.tanh %47 : vector<8x128xf32>
    %cst_21 = arith.constant 5.000000e-01 : f32
    %49 = vector.broadcast %cst_21 : f32 to vector<8x128xf32>
    %50 = arith.mulf %49, %48 : vector<8x128xf32>
    %cst_22 = arith.constant 5.000000e-01 : f32
    %51 = vector.broadcast %cst_22 : f32 to vector<8x128xf32>
    %52 = arith.addf %50, %51 : vector<8x128xf32>
    %53 = vector.extract_strided_slice %52 {offsets = [0, 0], sizes = [8, 32], strides = [1, 1]} : vector<8x128xf32> to vector<8x32xf32>
    %54 = vector.extract_strided_slice %52 {offsets = [0, 32], sizes = [8, 32], strides = [1, 1]} : vector<8x128xf32> to vector<8x32xf32>
    %55 = vector.extract_strided_slice %52 {offsets = [0, 64], sizes = [8, 32], strides = [1, 1]} : vector<8x128xf32> to vector<8x32xf32>
    %56 = vector.extract_strided_slice %48 {offsets = [0, 96], sizes = [8, 32], strides = [1, 1]} : vector<8x128xf32> to vector<8x32xf32>
    %57 = arith.mulf %54, %41 : vector<8x32xf32>
    %58 = arith.mulf %53, %56 : vector<8x32xf32>
    %59 = arith.addf %57, %58 : vector<8x32xf32>
    %60 = math.tanh %59 : vector<8x32xf32>
    %61 = arith.mulf %55, %60 : vector<8x32xf32>
    %c16 = arith.constant 16 : index
    %c0_23 = arith.constant 0 : index
    %62 = vector.load %arg13[%c16, %c0_23] : memref<64x32xf32, #tpu.memory_space<vmem>>, vector<8x32xf32>
    tpu.vector_store %arg13[%c16, %c0_23], %61 {strides = array<i32>} : memref<64x32xf32, #tpu.memory_space<vmem>>, vector<8x32xf32>,
    %cst_24 = arith.constant dense<0.000000e+00> : vector<8x128xf32>
    %63 = tpu.matmul %61, %6, %cst_24 {dimension_numbers = #tpu.dot_dimension_numbers<[1], [0], [0], [1], [0, 0, 1, 1], [], []>} : vector<8x32xf32>, vector<32x128xf32>, vector<8x128xf32> -> vector<8x128xf32>
    %64 = vector.extract_strided_slice %5 {offsets = [24, 0], sizes = [8, 128], strides = [1, 1]} : vector<64x128xf32> to vector<8x128xf32>
    %65 = arith.addf %63, %64 : vector<8x128xf32>
    %66 = math.tanh %65 : vector<8x128xf32>
    %cst_25 = arith.constant 5.000000e-01 : f32
    %67 = vector.broadcast %cst_25 : f32 to vector<8x128xf32>
    %68 = arith.mulf %67, %66 : vector<8x128xf32>
    %cst_26 = arith.constant 5.000000e-01 : f32
    %69 = vector.broadcast %cst_26 : f32 to vector<8x128xf32>
    %70 = arith.addf %68, %69 : vector<8x128xf32>
    %71 = vector.extract_strided_slice %70 {offsets = [0, 0], sizes = [8, 32], strides = [1, 1]} : vector<8x128xf32> to vector<8x32xf32>
    %72 = vector.extract_strided_slice %70 {offsets = [0, 32], sizes = [8, 32], strides = [1, 1]} : vector<8x128xf32> to vector<8x32xf32>
    %73 = vector.extract_strided_slice %70 {offsets = [0, 64], sizes = [8, 32], strides = [1, 1]} : vector<8x128xf32> to vector<8x32xf32>
    %74 = vector.extract_strided_slice %66 {offsets = [0, 96], sizes = [8, 32], strides = [1, 1]} : vector<8x128xf32> to vector<8x32xf32>
    %75 = arith.mulf %72, %59 : vector<8x32xf32>
    %76 = arith.mulf %71, %74 : vector<8x32xf32>
    %77 = arith.addf %75, %76 : vector<8x32xf32>
    %78 = math.tanh %77 : vector<8x32xf32>
    %79 = arith.mulf %73, %78 : vector<8x32xf32>
    %c24 = arith.constant 24 : index
    %c0_27 = arith.constant 0 : index
    %80 = vector.load %arg13[%c24, %c0_27] : memref<64x32xf32, #tpu.memory_space<vmem>>, vector<8x32xf32>
    tpu.vector_store %arg13[%c24, %c0_27], %79 {strides = array<i32>} : memref<64x32xf32, #tpu.memory_space<vmem>>, vector<8x32xf32>,
    %cst_28 = arith.constant dense<0.000000e+00> : vector<8x128xf32>
    %81 = tpu.matmul %79, %6, %cst_28 {dimension_numbers = #tpu.dot_dimension_numbers<[1], [0], [0], [1], [0, 0, 1, 1], [], []>} : vector<8x32xf32>, vector<32x128xf32>, vector<8x128xf32> -> vector<8x128xf32>
    %82 = vector.extract_strided_slice %5 {offsets = [32, 0], sizes = [8, 128], strides = [1, 1]} : vector<64x128xf32> to vector<8x128xf32>
    %83 = arith.addf %81, %82 : vector<8x128xf32>
    %84 = math.tanh %83 : vector<8x128xf32>
    %cst_29 = arith.constant 5.000000e-01 : f32
    %85 = vector.broadcast %cst_29 : f32 to vector<8x128xf32>
    %86 = arith.mulf %85, %84 : vector<8x128xf32>
    %cst_30 = arith.constant 5.000000e-01 : f32
    %87 = vector.broadcast %cst_30 : f32 to vector<8x128xf32>
    %88 = arith.addf %86, %87 : vector<8x128xf32>
    %89 = vector.extract_strided_slice %88 {offsets = [0, 0], sizes = [8, 32], strides = [1, 1]} : vector<8x128xf32> to vector<8x32xf32>
    %90 = vector.extract_strided_slice %88 {offsets = [0, 32], sizes = [8, 32], strides = [1, 1]} : vector<8x128xf32> to vector<8x32xf32>
    %91 = vector.extract_strided_slice %88 {offsets = [0, 64], sizes = [8, 32], strides = [1, 1]} : vector<8x128xf32> to vector<8x32xf32>
    %92 = vector.extract_strided_slice %84 {offsets = [0, 96], sizes = [8, 32], strides = [1, 1]} : vector<8x128xf32> to vector<8x32xf32>
    %93 = arith.mulf %90, %77 : vector<8x32xf32>
    %94 = arith.mulf %89, %92 : vector<8x32xf32>
    %95 = arith.addf %93, %94 : vector<8x32xf32>
    %96 = math.tanh %95 : vector<8x32xf32>
    %97 = arith.mulf %91, %96 : vector<8x32xf32>
    %c32 = arith.constant 32 : index
    %c0_31 = arith.constant 0 : index
    %98 = vector.load %arg13[%c32, %c0_31] : memref<64x32xf32, #tpu.memory_space<vmem>>, vector<8x32xf32>
    tpu.vector_store %arg13[%c32, %c0_31], %97 {strides = array<i32>} : memref<64x32xf32, #tpu.memory_space<vmem>>, vector<8x32xf32>,
    %cst_32 = arith.constant dense<0.000000e+00> : vector<8x128xf32>
    %99 = tpu.matmul %97, %6, %cst_32 {dimension_numbers = #tpu.dot_dimension_numbers<[1], [0], [0], [1], [0, 0, 1, 1], [], []>} : vector<8x32xf32>, vector<32x128xf32>, vector<8x128xf32> -> vector<8x128xf32>
    %100 = vector.extract_strided_slice %5 {offsets = [40, 0], sizes = [8, 128], strides = [1, 1]} : vector<64x128xf32> to vector<8x128xf32>
    %101 = arith.addf %99, %100 : vector<8x128xf32>
    %102 = math.tanh %101 : vector<8x128xf32>
    %cst_33 = arith.constant 5.000000e-01 : f32
    %103 = vector.broadcast %cst_33 : f32 to vector<8x128xf32>
    %104 = arith.mulf %103, %102 : vector<8x128xf32>
    %cst_34 = arith.constant 5.000000e-01 : f32
    %105 = vector.broadcast %cst_34 : f32 to vector<8x128xf32>
    %106 = arith.addf %104, %105 : vector<8x128xf32>
    %107 = vector.extract_strided_slice %106 {offsets = [0, 0], sizes = [8, 32], strides = [1, 1]} : vector<8x128xf32> to vector<8x32xf32>
    %108 = vector.extract_strided_slice %106 {offsets = [0, 32], sizes = [8, 32], strides = [1, 1]} : vector<8x128xf32> to vector<8x32xf32>
    %109 = vector.extract_strided_slice %106 {offsets = [0, 64], sizes = [8, 32], strides = [1, 1]} : vector<8x128xf32> to vector<8x32xf32>
    %110 = vector.extract_strided_slice %102 {offsets = [0, 96], sizes = [8, 32], strides = [1, 1]} : vector<8x128xf32> to vector<8x32xf32>
    %111 = arith.mulf %108, %95 : vector<8x32xf32>
    %112 = arith.mulf %107, %110 : vector<8x32xf32>
    %113 = arith.addf %111, %112 : vector<8x32xf32>
    %114 = math.tanh %113 : vector<8x32xf32>
    %115 = arith.mulf %109, %114 : vector<8x32xf32>
    %c40 = arith.constant 40 : index
    %c0_35 = arith.constant 0 : index
    %116 = vector.load %arg13[%c40, %c0_35] : memref<64x32xf32, #tpu.memory_space<vmem>>, vector<8x32xf32>
    tpu.vector_store %arg13[%c40, %c0_35], %115 {strides = array<i32>} : memref<64x32xf32, #tpu.memory_space<vmem>>, vector<8x32xf32>,
    %cst_36 = arith.constant dense<0.000000e+00> : vector<8x128xf32>
    %117 = tpu.matmul %115, %6, %cst_36 {dimension_numbers = #tpu.dot_dimension_numbers<[1], [0], [0], [1], [0, 0, 1, 1], [], []>} : vector<8x32xf32>, vector<32x128xf32>, vector<8x128xf32> -> vector<8x128xf32>
    %118 = vector.extract_strided_slice %5 {offsets = [48, 0], sizes = [8, 128], strides = [1, 1]} : vector<64x128xf32> to vector<8x128xf32>
    %119 = arith.addf %117, %118 : vector<8x128xf32>
    %120 = math.tanh %119 : vector<8x128xf32>
    %cst_37 = arith.constant 5.000000e-01 : f32
    %121 = vector.broadcast %cst_37 : f32 to vector<8x128xf32>
    %122 = arith.mulf %121, %120 : vector<8x128xf32>
    %cst_38 = arith.constant 5.000000e-01 : f32
    %123 = vector.broadcast %cst_38 : f32 to vector<8x128xf32>
    %124 = arith.addf %122, %123 : vector<8x128xf32>
    %125 = vector.extract_strided_slice %124 {offsets = [0, 0], sizes = [8, 32], strides = [1, 1]} : vector<8x128xf32> to vector<8x32xf32>
    %126 = vector.extract_strided_slice %124 {offsets = [0, 32], sizes = [8, 32], strides = [1, 1]} : vector<8x128xf32> to vector<8x32xf32>
    %127 = vector.extract_strided_slice %124 {offsets = [0, 64], sizes = [8, 32], strides = [1, 1]} : vector<8x128xf32> to vector<8x32xf32>
    %128 = vector.extract_strided_slice %120 {offsets = [0, 96], sizes = [8, 32], strides = [1, 1]} : vector<8x128xf32> to vector<8x32xf32>
    %129 = arith.mulf %126, %113 : vector<8x32xf32>
    %130 = arith.mulf %125, %128 : vector<8x32xf32>
    %131 = arith.addf %129, %130 : vector<8x32xf32>
    %132 = math.tanh %131 : vector<8x32xf32>
    %133 = arith.mulf %127, %132 : vector<8x32xf32>
    %c48 = arith.constant 48 : index
    %c0_39 = arith.constant 0 : index
    %134 = vector.load %arg13[%c48, %c0_39] : memref<64x32xf32, #tpu.memory_space<vmem>>, vector<8x32xf32>
    tpu.vector_store %arg13[%c48, %c0_39], %133 {strides = array<i32>} : memref<64x32xf32, #tpu.memory_space<vmem>>, vector<8x32xf32>,
    %cst_40 = arith.constant dense<0.000000e+00> : vector<8x128xf32>
    %135 = tpu.matmul %133, %6, %cst_40 {dimension_numbers = #tpu.dot_dimension_numbers<[1], [0], [0], [1], [0, 0, 1, 1], [], []>} : vector<8x32xf32>, vector<32x128xf32>, vector<8x128xf32> -> vector<8x128xf32>
    %136 = vector.extract_strided_slice %5 {offsets = [56, 0], sizes = [8, 128], strides = [1, 1]} : vector<64x128xf32> to vector<8x128xf32>
    %137 = arith.addf %135, %136 : vector<8x128xf32>
    %138 = math.tanh %137 : vector<8x128xf32>
    %cst_41 = arith.constant 5.000000e-01 : f32
    %139 = vector.broadcast %cst_41 : f32 to vector<8x128xf32>
    %140 = arith.mulf %139, %138 : vector<8x128xf32>
    %cst_42 = arith.constant 5.000000e-01 : f32
    %141 = vector.broadcast %cst_42 : f32 to vector<8x128xf32>
    %142 = arith.addf %140, %141 : vector<8x128xf32>
    %143 = vector.extract_strided_slice %142 {offsets = [0, 0], sizes = [8, 32], strides = [1, 1]} : vector<8x128xf32> to vector<8x32xf32>
    %144 = vector.extract_strided_slice %142 {offsets = [0, 32], sizes = [8, 32], strides = [1, 1]} : vector<8x128xf32> to vector<8x32xf32>
    %145 = vector.extract_strided_slice %142 {offsets = [0, 64], sizes = [8, 32], strides = [1, 1]} : vector<8x128xf32> to vector<8x32xf32>
    %146 = vector.extract_strided_slice %138 {offsets = [0, 96], sizes = [8, 32], strides = [1, 1]} : vector<8x128xf32> to vector<8x32xf32>
    %147 = arith.mulf %144, %131 : vector<8x32xf32>
    %148 = arith.mulf %143, %146 : vector<8x32xf32>
    %149 = arith.addf %147, %148 : vector<8x32xf32>
    %150 = math.tanh %149 : vector<8x32xf32>
    %151 = arith.mulf %145, %150 : vector<8x32xf32>
    %c56 = arith.constant 56 : index
    %c0_43 = arith.constant 0 : index
    %152 = vector.load %arg13[%c56, %c0_43] : memref<64x32xf32, #tpu.memory_space<vmem>>, vector<8x32xf32>
    tpu.vector_store %arg13[%c56, %c0_43], %151 {strides = array<i32>} : memref<64x32xf32, #tpu.memory_space<vmem>>, vector<8x32xf32>,
    %c0_44 = arith.constant 0 : index
    %c0_45 = arith.constant 0 : index
    %153 = vector.load %arg11[%c0_44, %c0_45] : memref<8x32xf32, #tpu.memory_space<vmem>>, vector<8x32xf32>
    tpu.vector_store %arg11[%c0_44, %c0_45], %151 {strides = array<i32>} : memref<8x32xf32, #tpu.memory_space<vmem>>, vector<8x32xf32>,
    %c0_46 = arith.constant 0 : index
    %c0_47 = arith.constant 0 : index
    %154 = vector.load %arg12[%c0_46, %c0_47] : memref<8x32xf32, #tpu.memory_space<vmem>>, vector<8x32xf32>
    tpu.vector_store %arg12[%c0_46, %c0_47], %149 {strides = array<i32>} : memref<8x32xf32, #tpu.memory_space<vmem>>, vector<8x32xf32>,
    %c0_48 = arith.constant 0 : index
    %c0_49 = arith.constant 0 : index
    %155 = vector.load %arg13[%c0_48, %c0_49] : memref<64x32xf32, #tpu.memory_space<vmem>>, vector<64x32xf32>
    %c0_50 = arith.constant 0 : index
    %c0_51 = arith.constant 0 : index
    %156 = vector.load %arg4[%c0_50, %c0_51] : memref<32x128xf32, #tpu.memory_space<vmem>>, vector<32x128xf32>
    %cst_52 = arith.constant dense<0.000000e+00> : vector<64x128xf32>
    %157 = tpu.matmul %155, %156, %cst_52 {dimension_numbers = #tpu.dot_dimension_numbers<[1], [0], [0], [1], [0, 0, 1, 1], [], []>} : vector<64x32xf32>, vector<32x128xf32>, vector<64x128xf32> -> vector<64x128xf32>
    %c0_53 = arith.constant 0 : index
    %c0_54 = arith.constant 0 : index
    %158 = vector.load %arg5[%c0_53, %c0_54] : memref<1x128xf32, #tpu.memory_space<vmem>>, vector<1x128xf32>
    %159 = vector.broadcast %158 : vector<1x128xf32> to vector<64x128xf32>
    %160 = arith.addf %157, %159 : vector<64x128xf32>
    %cst_55 = arith.constant 0.000000e+00 : f32
    %161 = vector.broadcast %cst_55 : f32 to vector<64x128xf32>
    %162 = arith.maximumf %160, %161 : vector<64x128xf32>
    %c0_56 = arith.constant 0 : index
    %c0_57 = arith.constant 0 : index
    %163 = vector.load %arg6[%c0_56, %c0_57] : memref<128x128xf32, #tpu.memory_space<vmem>>, vector<128x128xf32>
    %cst_58 = arith.constant dense<0.000000e+00> : vector<64x128xf32>
    %164 = tpu.matmul %162, %163, %cst_58 {dimension_numbers = #tpu.dot_dimension_numbers<[1], [0], [0], [1], [0, 0, 1, 1], [], []>} : vector<64x128xf32>, vector<128x128xf32>, vector<64x128xf32> -> vector<64x128xf32>
    %c0_59 = arith.constant 0 : index
    %c0_60 = arith.constant 0 : index
    %165 = vector.load %arg7[%c0_59, %c0_60] : memref<1x128xf32, #tpu.memory_space<vmem>>, vector<1x128xf32>
    %166 = vector.broadcast %165 : vector<1x128xf32> to vector<64x128xf32>
    %167 = arith.addf %164, %166 : vector<64x128xf32>
    %c0_61 = arith.constant 0 : index
    %c0_62 = arith.constant 0 : index
    %168 = vector.load %arg10[%c0_61, %c0_62] : memref<64x128xf32, #tpu.memory_space<vmem>>, vector<64x128xf32>
    tpu.vector_store %arg10[%c0_61, %c0_62], %167 {strides = array<i32>} : memref<64x128xf32, #tpu.memory_space<vmem>>, vector<64x128xf32>,
    return
  }
}

</mosaic_0001>

<llo_original>
// kernel: drq_net_forward.1
$region0: #{drq_net_forward.1}
  #allocation0 [shape = 'u32[]', space=smem, size = 0x4, offset = 0x4, fixed_abs, tag = 'smem constant byte address 0x4 - core index']
  #allocation1 [shape = 'u32[72,128]{1,0:T(1,128)}', space=vmem, size = 0x9000, scoped, tag = 'internal scratch']
  #allocation2 [shape = 'f32[64,32]{1,0:T(8,128)}', space=vmem, size = 0x8000, scoped, tag = 'scratch operand']
  %s0 = inlined_call_operand.vmem [shape: f32[64,16], index: 0, kind: input, shape index: {}]
  %s1 = inlined_call_operand.vmem [shape: f32[16,128], index: 1, kind: input, shape index: {}]
  %s2 = inlined_call_operand.vmem [shape: f32[32,128], index: 2, kind: input, shape index: {}]
  %s3 = inlined_call_operand.vmem [shape: f32[1,128], index: 3, kind: input, shape index: {}]
  %s4 = inlined_call_operand.vmem [shape: f32[32,128], index: 4, kind: input, shape index: {}]
  %s5 = inlined_call_operand.vmem [shape: f32[1,128], index: 5, kind: input, shape index: {}]
  %s6 = inlined_call_operand.vmem [shape: f32[128,128], index: 6, kind: input, shape index: {}]
  %s7 = inlined_call_operand.vmem [shape: f32[1,128], index: 7, kind: input, shape index: {}]
  %s8 = inlined_call_operand.vmem [shape: f32[8,32], index: 8, kind: input, shape index: {}, may-alias: {8,11}]
  %s9 = inlined_call_operand.vmem [shape: f32[8,32], index: 9, kind: input, shape index: {}, may-alias: {9,12}]
  %s10 = inlined_call_operand.vmem [shape: f32[64,128], index: 10, kind: output, shape index: {0}]
  %s11 = inlined_call_operand.vmem [shape: f32[8,32], index: 11, kind: output, shape index: {1}, may-alias: {8,11}]
  %s12 = inlined_call_operand.vmem [shape: f32[8,32], index: 12, kind: output, shape index: {2}, may-alias: {9,12}]
  %13 = xla_tuple %s10, %s11, %s12
  %s14 = sld [smem:[#allocation0]]
  $region66: #{drq_net_forward.1} parent=0
    _
  %s16 = ssub.s32 1, %s14
  %s17 = scalar_select 0, %s16, %s14
  // Predicated region
  $region2: #{drq_net_forward.1} parent=0 // pred_check
    _
  $region3: #{drq_net_forward.1} parent=0 // pred_check_branch
    %19 = sbr.rel (0) target = $region5
  $region4: #{drq_net_forward.1} parent=0 // pred_region
    _
  $region5: #{drq_net_forward.1} parent=0 // pred_fallthru
    _
  // Predicated region
  $region6: #{drq_net_forward.1} parent=0 // pred_check
    _
  $region7: #{drq_net_forward.1} parent=0 // pred_check_branch
    %21 = sbr.rel (0) target = $region9
  $region8: #{drq_net_forward.1} parent=0 // pred_region
    _
  $region9: #{drq_net_forward.1} parent=0 // pred_fallthru
    _
  // Predicated region
  $region10: #{drq_net_forward.1} parent=0 // pred_check
    _
  $region11: #{drq_net_forward.1} parent=0 // pred_check_branch
    %23 = sbr.rel (0) target = $region13
  $region12: #{drq_net_forward.1} parent=0 // pred_region
    _
  $region13: #{drq_net_forward.1} parent=0 // pred_fallthru
    _
  // Predicated region
  $region14: #{drq_net_forward.1} parent=0 // pred_check
    _
  $region15: #{drq_net_forward.1} parent=0 // pred_check_branch
    %25 = sbr.rel (0) target = $region17
  $region16: #{drq_net_forward.1} parent=0 // pred_region
    _
  $region17: #{drq_net_forward.1} parent=0 // pred_fallthru
    _
  // Predicated region
  $region18: #{drq_net_forward.1} parent=0 // pred_check
    _
  $region19: #{drq_net_forward.1} parent=0 // pred_check_branch
    %27 = sbr.rel (0) target = $region21
  $region20: #{drq_net_forward.1} parent=0 // pred_region
    _
  $region21: #{drq_net_forward.1} parent=0 // pred_fallthru
    _
  // Predicated region
  $region22: #{drq_net_forward.1} parent=0 // pred_check
    _
  $region23: #{drq_net_forward.1} parent=0 // pred_check_branch
    %29 = sbr.rel (0) target = $region25
  $region24: #{drq_net_forward.1} parent=0 // pred_region
    _
  $region25: #{drq_net_forward.1} parent=0 // pred_fallthru
    _
  // Predicated region
  $region26: #{drq_net_forward.1} parent=0 // pred_check
    _
  $region27: #{drq_net_forward.1} parent=0 // pred_check_branch
    %31 = sbr.rel (0) target = $region29
  $region28: #{drq_net_forward.1} parent=0 // pred_region
    _
  $region29: #{drq_net_forward.1} parent=0 // pred_fallthru
    _
  // Predicated region
  $region30: #{drq_net_forward.1} parent=0 // pred_check
    _
  $region31: #{drq_net_forward.1} parent=0 // pred_check_branch
    %33 = sbr.rel (0) target = $region33
  $region32: #{drq_net_forward.1} parent=0 // pred_region
    _
  $region33: #{drq_net_forward.1} parent=0 // pred_fallthru
    _
  // Predicated region
  $region34: #{drq_net_forward.1} parent=0 // pred_check
    _
  $region35: #{drq_net_forward.1} parent=0 // pred_check_branch
    %35 = sbr.rel (0) target = $region37
  $region36: #{drq_net_forward.1} parent=0 // pred_region
    _
  $region37: #{drq_net_forward.1} parent=0 // pred_fallthru
    _
  // Predicated region
  $region38: #{drq_net_forward.1} parent=0 // pred_check
    _
  $region39: #{drq_net_forward.1} parent=0 // pred_check_branch
    %37 = sbr.rel (0) target = $region41
  $region40: #{drq_net_forward.1} parent=0 // pred_region
    _
  $region41: #{drq_net_forward.1} parent=0 // pred_fallthru
    _
  %v38 = vld [vmem:[%s0] sm:$0xff]
  %v39 = vld [vmem:[%s0 + $0x8] sm:$0xff]
  %v40 = vld [vmem:[%s0 + $0x10] sm:$0xff]
  %v41 = vld [vmem:[%s0 + $0x18] sm:$0xff]
  %v42 = vld [vmem:[%s0 + $0x20] sm:$0xff]
  %v43 = vld [vmem:[%s0 + $0x28] sm:$0xff]
  %v44 = vld [vmem:[%s0 + $0x30] sm:$0xff]
  %v45 = vld [vmem:[%s0 + $0x38] sm:$0xff]
  %v46 = vld [vmem:[%s1] sm:$0xff]
  %v47 = vld [vmem:[%s1 + $0x8] sm:$0xff]
  %v48 = vld [vmem:[%s3] sm:$0x1]
  %v50 = vperm.slane %v48, 0
  %vm52 = vcmask 130048
  %v54 = vsel %vm52, %v38, 0
  %v57 = vsel %vm52, %v39, 0
  %v60 = vsel %vm52, %v40, 0
  %v63 = vsel %vm52, %v41, 0
  %v66 = vsel %vm52, %v42, 0
  %v69 = vsel %vm52, %v43, 0
  %v72 = vsel %vm52, %v44, 0
  %v75 = vsel %vm52, %v45, 0
  %77 = vmatpush.msra.mxu0 0.0
  %78 = vmatpush.msra.mxu0 0.0
  %79 = vmatpush.msra.mxu0 0.0
  %80 = vmatpush.msra.mxu0 0.0
  %81 = vmatpush.msra.mxu0 0.0
  %82 = vmatpush.msra.mxu0 0.0
  %83 = vmatpush.msra.mxu0 0.0
  %84 = vmatpush.msra.mxu0 0.0
  %85 = vmatpush.msra.mxu0 0.0
  %86 = vmatpush.msra.mxu0 0.0
  %87 = vmatpush.msra.mxu0 0.0
  %88 = vmatpush.msra.mxu0 0.0
  %89 = vmatpush.msra.mxu0 0.0
  %90 = vmatpush.msra.mxu0 0.0
  %91 = vmatpush.msra.mxu0 %v47
  %92 = vmatpush.msra.mxu0 %v46
  %93 = vmatmul.f32.gmra.mxu0 %v54
  %v94 = vpop.f32.mrf.mxu0
  %v95 = vadd.f32 %v50, %v94
  %96 = vmatmul.f32.gmra.mxu0 %v57
  %v97 = vpop.f32.mrf.mxu0
  %v98 = vadd.f32 %v50, %v97
  %99 = vmatmul.f32.gmra.mxu0 %v60
  %v100 = vpop.f32.mrf.mxu0
  %v101 = vadd.f32 %v50, %v100
  %102 = vmatmul.f32.gmra.mxu0 %v63
  %v103 = vpop.f32.mrf.mxu0
  %v104 = vadd.f32 %v50, %v103
  %105 = vmatmul.f32.gmra.mxu0 %v66
  %v106 = vpop.f32.mrf.mxu0
  %v107 = vadd.f32 %v50, %v106
  %108 = vmatmul.f32.gmra.mxu0 %v69
  %v109 = vpop.f32.mrf.mxu0
  %v110 = vadd.f32 %v50, %v109
  %111 = vmatmul.f32.gmra.mxu0 %v72
  %v112 = vpop.f32.mrf.mxu0
  %v113 = vadd.f32 %v50, %v112
  %114 = vmatmul.f32.gmra.mxu0 %v75
  %v115 = vpop.f32.mrf.mxu0
  %v116 = vadd.f32 %v50, %v115
  %117 = vdwg.mxu0
  %v118 = vld [vmem:[%s2] sm:$0xff]
  %v119 = vld [vmem:[%s2 + $0x8] sm:$0xff]
  %v120 = vld [vmem:[%s2 + $0x10] sm:$0xff]
  %v121 = vld [vmem:[%s2 + $0x18] sm:$0xff]
  %v122 = vld [vmem:[%s8] sm:$0xff]
  %v123 = vld [vmem:[%s9] sm:$0xff]
  %vm124 = vcmask 261120
  %v126 = vsel %vm124, %v122, 0
  %128 = vmatpush.msra.mxu0 0.0
  %129 = vmatpush.msra.mxu0 0.0
  %130 = vmatpush.msra.mxu0 0.0
  %131 = vmatpush.msra.mxu0 0.0
  %132 = vmatpush.msra.mxu0 0.0
  %133 = vmatpush.msra.mxu0 0.0
  %134 = vmatpush.msra.mxu0 0.0
  %135 = vmatpush.msra.mxu0 0.0
  %136 = vmatpush.msra.mxu0 0.0
  %137 = vmatpush.msra.mxu0 0.0
  %138 = vmatpush.msra.mxu0 0.0
  %139 = vmatpush.msra.mxu0 0.0
  %140 = vmatpush.msra.mxu0 %v121
  %141 = vmatpush.msra.mxu0 %v120
  %142 = vmatpush.msra.mxu0 %v119
  %143 = vmatpush.msra.mxu0 %v118
  %144 = vmatmul.f32.gmra.mxu0 %v126
  %v145 = vpop.f32.mrf.mxu0
  %v146 = vadd.f32 %v95, %v145
  %147 = vdwg.mxu0
  %v148 = vtanh.pop %v146
  %v149 = vmul.f32 %v148, 0.5
  %v150 = vadd.f32 %v149, 0.5
  %152 = vrot.lane.b32.xlu0 %v123, 32
  %v153 = vpop.permute.xlu0 %152
  %v155 = vmul.f32 %v150, %v153
  %157 = vrot.lane.b32.xlu0 %v148, 32
  %v158 = vpop.permute.xlu0 %157
  %v160 = vmul.f32 %v150, %v158
  %162 = vrot.lane.b32.xlu0 %v160, 32
  %v163 = vpop.permute.xlu0 %162
  %v165 = vadd.f32 %v155, %v163
  %v166 = vtanh.pop %v165
  %168 = vrot.lane.b32.xlu0 %v166, 32
  %v169 = vpop.permute.xlu0 %168
  %v171 = vmul.f32 %v150, %v169
  %173 = vrot.lane.b32.xlu0 %v171, 64
  %v174 = vpop.permute.xlu0 %173
  %176 = vst.msk [vmem:[#allocation2] sm:$0xff] %vm124, %v174
  %v177 = vsel %vm124, %v174, 0
  %179 = vmatpush.msra.mxu0 0.0
  %180 = vmatpush.msra.mxu0 0.0
  %181 = vmatpush.msra.mxu0 0.0
  %182 = vmatpush.msra.mxu0 0.0
  %183 = vmatpush.msra.mxu0 0.0
  %184 = vmatpush.msra.mxu0 0.0
  %185 = vmatpush.msra.mxu0 0.0
  %186 = vmatpush.msra.mxu0 0.0
  %187 = vmatpush.msra.mxu0 0.0
  %188 = vmatpush.msra.mxu0 0.0
  %189 = vmatpush.msra.mxu0 0.0
  %190 = vmatpush.msra.mxu0 0.0
  %191 = vmatpush.msra.mxu0 %v121
  %192 = vmatpush.msra.mxu0 %v120
  %193 = vmatpush.msra.mxu0 %v119
  %194 = vmatpush.msra.mxu0 %v118
  %195 = vmatmul.f32.gmra.mxu0 %v177
  %v196 = vpop.f32.mrf.mxu0
  %v197 = vadd.f32 %v98, %v196
  %198 = vdwg.mxu0
  %v199 = vtanh.pop %v197
  %v200 = vmul.f32 %v199, 0.5
  %v201 = vadd.f32 %v200, 0.5
  %v202 = vmul.f32 %v201, %v165
  %204 = vrot.lane.b32.xlu0 %v199, 32
  %v205 = vpop.permute.xlu0 %204
  %v207 = vmul.f32 %v201, %v205
  %209 = vrot.lane.b32.xlu0 %v207, 32
  %v210 = vpop.permute.xlu0 %209
  %v212 = vadd.f32 %v202, %v210
  %v213 = vtanh.pop %v212
  %215 = vrot.lane.b32.xlu0 %v213, 32
  %v216 = vpop.permute.xlu0 %215
  %v218 = vmul.f32 %v201, %v216
  %220 = vrot.lane.b32.xlu0 %v218, 64
  %v221 = vpop.permute.xlu0 %220
  %223 = vst.msk [vmem:[#allocation2 + $0x8] sm:$0xff] %vm124, %v221
  %v224 = vsel %vm124, %v221, 0
  %226 = vmatpush.msra.mxu0 0.0
  %227 = vmatpush.msra.mxu0 0.0
  %228 = vmatpush.msra.mxu0 0.0
  %229 = vmatpush.msra.mxu0 0.0
  %230 = vmatpush.msra.mxu0 0.0
  %231 = vmatpush.msra.mxu0 0.0
  %232 = vmatpush.msra.mxu0 0.0
  %233 = vmatpush.msra.mxu0 0.0
  %234 = vmatpush.msra.mxu0 0.0
  %235 = vmatpush.msra.mxu0 0.0
  %236 = vmatpush.msra.mxu0 0.0
  %237 = vmatpush.msra.mxu0 0.0
  %238 = vmatpush.msra.mxu0 %v121
  %239 = vmatpush.msra.mxu0 %v120
  %240 = vmatpush.msra.mxu0 %v119
  %241 = vmatpush.msra.mxu0 %v118
  %242 = vmatmul.f32.gmra.mxu0 %v224
  %v243 = vpop.f32.mrf.mxu0
  %v244 = vadd.f32 %v101, %v243
  %245 = vdwg.mxu0
  %v246 = vtanh.pop %v244
  %v247 = vmul.f32 %v246, 0.5
  %v248 = vadd.f32 %v247, 0.5
  %v249 = vmul.f32 %v248, %v212
  %251 = vrot.lane.b32.xlu0 %v246, 32
  %v252 = vpop.permute.xlu0 %251
  %v254 = vmul.f32 %v248, %v252
  %256 = vrot.lane.b32.xlu0 %v254, 32
  %v257 = vpop.permute.xlu0 %256
  %v259 = vadd.f32 %v249, %v257
  %v260 = vtanh.pop %v259
  %262 = vrot.lane.b32.xlu0 %v260, 32
  %v263 = vpop.permute.xlu0 %262
  %v265 = vmul.f32 %v248, %v263
  %267 = vrot.lane.b32.xlu0 %v265, 64
  %v268 = vpop.permute.xlu0 %267
  %270 = vst.msk [vmem:[#allocation2 + $0x10] sm:$0xff] %vm124, %v268
  %v271 = vsel %vm124, %v268, 0
  %273 = vmatpush.msra.mxu0 0.0
  %274 = vmatpush.msra.mxu0 0.0
  %275 = vmatpush.msra.mxu0 0.0
  %276 = vmatpush.msra.mxu0 0.0
  %277 = vmatpush.msra.mxu0 0.0
  %278 = vmatpush.msra.mxu0 0.0
  %279 = vmatpush.msra.mxu0 0.0
  %280 = vmatpush.msra.mxu0 0.0
  %281 = vmatpush.msra.mxu0 0.0
  %282 = vmatpush.msra.mxu0 0.0
  %283 = vmatpush.msra.mxu0 0.0
  %284 = vmatpush.msra.mxu0 0.0
  %285 = vmatpush.msra.mxu0 %v121
  %286 = vmatpush.msra.mxu0 %v120
  %287 = vmatpush.msra.mxu0 %v119
  %288 = vmatpush.msra.mxu0 %v118
  %289 = vmatmul.f32.gmra.mxu0 %v271
  %v290 = vpop.f32.mrf.mxu0
  %v291 = vadd.f32 %v104, %v290
  %292 = vdwg.mxu0
  %v293 = vtanh.pop %v291
  %v294 = vmul.f32 %v293, 0.5
  %v295 = vadd.f32 %v294, 0.5
  %v296 = vmul.f32 %v295, %v259
  %298 = vrot.lane.b32.xlu0 %v293, 32
  %v299 = vpop.permute.xlu0 %298
  %v301 = vmul.f32 %v295, %v299
  %303 = vrot.lane.b32.xlu0 %v301, 32
  %v304 = vpop.permute.xlu0 %303
  %v306 = vadd.f32 %v296, %v304
  %v307 = vtanh.pop %v306
  %309 = vrot.lane.b32.xlu0 %v307, 32
  %v310 = vpop.permute.xlu0 %309
  %v312 = vmul.f32 %v295, %v310
  %314 = vrot.lane.b32.xlu0 %v312, 64
  %v315 = vpop.permute.xlu0 %314
  %317 = vst.msk [vmem:[#allocation2 + $0x18] sm:$0xff] %vm124, %v315
  %v318 = vsel %vm124, %v315, 0
  %320 = vmatpush.msra.mxu0 0.0
  %321 = vmatpush.msra.mxu0 0.0
  %322 = vmatpush.msra.mxu0 0.0
  %323 = vmatpush.msra.mxu0 0.0
  %324 = vmatpush.msra.mxu0 0.0
  %325 = vmatpush.msra.mxu0 0.0
  %326 = vmatpush.msra.mxu0 0.0
  %327 = vmatpush.msra.mxu0 0.0
  %328 = vmatpush.msra.mxu0 0.0
  %329 = vmatpush.msra.mxu0 0.0
  %330 = vmatpush.msra.mxu0 0.0
  %331 = vmatpush.msra.mxu0 0.0
  %332 = vmatpush.msra.mxu0 %v121
  %333 = vmatpush.msra.mxu0 %v120
  %334 = vmatpush.msra.mxu0 %v119
  %335 = vmatpush.msra.mxu0 %v118
  %336 = vmatmul.f32.gmra.mxu0 %v318
  %v337 = vpop.f32.mrf.mxu0
  %v338 = vadd.f32 %v107, %v337
  %339 = vdwg.mxu0
  %v340 = vtanh.pop %v338
  %v341 = vmul.f32 %v340, 0.5
  %v342 = vadd.f32 %v341, 0.5
  %v343 = vmul.f32 %v342, %v306
  %345 = vrot.lane.b32.xlu0 %v340, 32
  %v346 = vpop.permute.xlu0 %345
  %v348 = vmul.f32 %v342, %v346
  %350 = vrot.lane.b32.xlu0 %v348, 32
  %v351 = vpop.permute.xlu0 %350
  %v353 = vadd.f32 %v343, %v351
  %v354 = vtanh.pop %v353
  %356 = vrot.lane.b32.xlu0 %v354, 32
  %v357 = vpop.permute.xlu0 %356
  %v359 = vmul.f32 %v342, %v357
  %361 = vrot.lane.b32.xlu0 %v359, 64
  %v362 = vpop.permute.xlu0 %361
  %364 = vst.msk [vmem:[#allocation2 + $0x20] sm:$0xff] %vm124, %v362
  %v365 = vsel %vm124, %v362, 0
  %367 = vmatpush.msra.mxu0 0.0
  %368 = vmatpush.msra.mxu0 0.0
  %369 = vmatpush.msra.mxu0 0.0
  %370 = vmatpush.msra.mxu0 0.0
  %371 = vmatpush.msra.mxu0 0.0
  %372 = vmatpush.msra.mxu0 0.0
  %373 = vmatpush.msra.mxu0 0.0
  %374 = vmatpush.msra.mxu0 0.0
  %375 = vmatpush.msra.mxu0 0.0
  %376 = vmatpush.msra.mxu0 0.0
  %377 = vmatpush.msra.mxu0 0.0
  %378 = vmatpush.msra.mxu0 0.0
  %379 = vmatpush.msra.mxu0 %v121
  %380 = vmatpush.msra.mxu0 %v120
  %381 = vmatpush.msra.mxu0 %v119
  %382 = vmatpush.msra.mxu0 %v118
  %383 = vmatmul.f32.gmra.mxu0 %v365
  %v384 = vpop.f32.mrf.mxu0
  %v385 = vadd.f32 %v110, %v384
  %386 = vdwg.mxu0
  %v387 = vtanh.pop %v385
  %v388 = vmul.f32 %v387, 0.5
  %v389 = vadd.f32 %v388, 0.5
  %v390 = vmul.f32 %v389, %v353
  %392 = vrot.lane.b32.xlu0 %v387, 32
  %v393 = vpop.permute.xlu0 %392
  %v395 = vmul.f32 %v389, %v393
  %397 = vrot.lane.b32.xlu0 %v395, 32
  %v398 = vpop.permute.xlu0 %397
  %v400 = vadd.f32 %v390, %v398
  %v401 = vtanh.pop %v400
  %403 = vrot.lane.b32.xlu0 %v401, 32
  %v404 = vpop.permute.xlu0 %403
  %v406 = vmul.f32 %v389, %v404
  %408 = vrot.lane.b32.xlu0 %v406, 64
  %v409 = vpop.permute.xlu0 %408
  %411 = vst.msk [vmem:[#allocation2 + $0x28] sm:$0xff] %vm124, %v409
  %v412 = vsel %vm124, %v409, 0
  %414 = vmatpush.msra.mxu0 0.0
  %415 = vmatpush.msra.mxu0 0.0
  %416 = vmatpush.msra.mxu0 0.0
  %417 = vmatpush.msra.mxu0 0.0
  %418 = vmatpush.msra.mxu0 0.0
  %419 = vmatpush.msra.mxu0 0.0
  %420 = vmatpush.msra.mxu0 0.0
  %421 = vmatpush.msra.mxu0 0.0
  %422 = vmatpush.msra.mxu0 0.0
  %423 = vmatpush.msra.mxu0 0.0
  %424 = vmatpush.msra.mxu0 0.0
  %425 = vmatpush.msra.mxu0 0.0
  %426 = vmatpush.msra.mxu0 %v121
  %427 = vmatpush.msra.mxu0 %v120
  %428 = vmatpush.msra.mxu0 %v119
  %429 = vmatpush.msra.mxu0 %v118
  %430 = vmatmul.f32.gmra.mxu0 %v412
  %v431 = vpop.f32.mrf.mxu0
  %v432 = vadd.f32 %v113, %v431
  %433 = vdwg.mxu0
  %v434 = vtanh.pop %v432
  %v435 = vmul.f32 %v434, 0.5
  %v436 = vadd.f32 %v435, 0.5
  %v437 = vmul.f32 %v436, %v400
  %439 = vrot.lane.b32.xlu0 %v434, 32
  %v440 = vpop.permute.xlu0 %439
  %v442 = vmul.f32 %v436, %v440
  %444 = vrot.lane.b32.xlu0 %v442, 32
  %v445 = vpop.permute.xlu0 %444
  %v447 = vadd.f32 %v437, %v445
  %v448 = vtanh.pop %v447
  %450 = vrot.lane.b32.xlu0 %v448, 32
  %v451 = vpop.permute.xlu0 %450
  %v453 = vmul.f32 %v436, %v451
  %455 = vrot.lane.b32.xlu0 %v453, 64
  %v456 = vpop.permute.xlu0 %455
  %458 = vst.msk [vmem:[#allocation2 + $0x30] sm:$0xff] %vm124, %v456
  %v459 = vsel %vm124, %v456, 0
  %461 = vmatpush.msra.mxu0 0.0
  %462 = vmatpush.msra.mxu0 0.0
  %463 = vmatpush.msra.mxu0 0.0
  %464 = vmatpush.msra.mxu0 0.0
  %465 = vmatpush.msra.mxu0 0.0
  %466 = vmatpush.msra.mxu0 0.0
  %467 = vmatpush.msra.mxu0 0.0
  %468 = vmatpush.msra.mxu0 0.0
  %469 = vmatpush.msra.mxu0 0.0
  %470 = vmatpush.msra.mxu0 0.0
  %471 = vmatpush.msra.mxu0 0.0
  %472 = vmatpush.msra.mxu0 0.0
  %473 = vmatpush.msra.mxu0 %v121
  %474 = vmatpush.msra.mxu0 %v120
  %475 = vmatpush.msra.mxu0 %v119
  %476 = vmatpush.msra.mxu0 %v118
  %477 = vmatmul.f32.gmra.mxu0 %v459
  %v478 = vpop.f32.mrf.mxu0
  %v479 = vadd.f32 %v116, %v478
  %480 = vdwg.mxu0
  %v481 = vtanh.pop %v479
  %v482 = vmul.f32 %v481, 0.5
  %v483 = vadd.f32 %v482, 0.5
  %v484 = vmul.f32 %v483, %v447
  %486 = vrot.lane.b32.xlu0 %v481, 32
  %v487 = vpop.permute.xlu0 %486
  %v489 = vmul.f32 %v483, %v487
  %491 = vrot.lane.b32.xlu0 %v489, 32
  %v492 = vpop.permute.xlu0 %491
  %v494 = vadd.f32 %v484, %v492
  %v495 = vtanh.pop %v494
  %497 = vrot.lane.b32.xlu0 %v495, 32
  %v498 = vpop.permute.xlu0 %497
  %v500 = vmul.f32 %v483, %v498
  %502 = vrot.lane.b32.xlu0 %v500, 64
  %v503 = vpop.permute.xlu0 %502
  %505 = vst.msk [vmem:[#allocation2 + $0x38] sm:$0xff] %vm124, %v503
  %506 = vst.msk [vmem:[%s11] sm:$0xff] %vm124, %v503
  %508 = vrot.lane.b32.xlu0 %v494, 96
  %v509 = vpop.permute.xlu0 %508
  %511 = vst.msk [vmem:[%s12] sm:$0xff] %vm124, %v509
  %v512 = vld [vmem:[#allocation2] sm:$0xff]
  %v513 = vld [vmem:[#allocation2 + $0x8] sm:$0xff]
  %v514 = vld [vmem:[#allocation2 + $0x10] sm:$0xff]
  %v515 = vld [vmem:[#allocation2 + $0x18] sm:$0xff]
  %v516 = vld [vmem:[#allocation2 + $0x20] sm:$0xff]
  %v517 = vld [vmem:[#allocation2 + $0x28] sm:$0xff]
  %v518 = vld [vmem:[#allocation2 + $0x30] sm:$0xff]
  %v519 = vld [vmem:[#allocation2 + $0x38] sm:$0xff]
  %v520 = vld [vmem:[%s4] sm:$0xff]
  %v521 = vld [vmem:[%s4 + $0x8] sm:$0xff]
  %v522 = vld [vmem:[%s4 + $0x10] sm:$0xff]
  %v523 = vld [vmem:[%s4 + $0x18] sm:$0xff]
  %v524 = vld [vmem:[%s5] sm:$0x1]
  %v526 = vperm.slane %v524, 0
  %v529 = vsel %vm124, %v512, 0
  %v532 = vsel %vm124, %v513, 0
  %v535 = vsel %vm124, %v514, 0
  %v538 = vsel %vm124, %v515, 0
  %v541 = vsel %vm124, %v516, 0
  %v544 = vsel %vm124, %v517, 0
  %v547 = vsel %vm124, %v518, 0
  %v550 = vsel %vm124, %v519, 0
  %552 = vmatpush.msra.mxu0 0.0
  %553 = vmatpush.msra.mxu0 0.0
  %554 = vmatpush.msra.mxu0 0.0
  %555 = vmatpush.msra.mxu0 0.0
  %556 = vmatpush.msra.mxu0 0.0
  %557 = vmatpush.msra.mxu0 0.0
  %558 = vmatpush.msra.mxu0 0.0
  %559 = vmatpush.msra.mxu0 0.0
  %560 = vmatpush.msra.mxu0 0.0
  %561 = vmatpush.msra.mxu0 0.0
  %562 = vmatpush.msra.mxu0 0.0
  %563 = vmatpush.msra.mxu0 0.0
  %564 = vmatpush.msra.mxu0 %v523
  %565 = vmatpush.msra.mxu0 %v522
  %566 = vmatpush.msra.mxu0 %v521
  %567 = vmatpush.msra.mxu0 %v520
  %568 = vmatmul.f32.gmra.mxu0 %v529
  %v569 = vpop.f32.mrf.mxu0
  %v570 = vadd.f32 %v526, %v569
  %571 = vmatmul.f32.gmra.mxu0 %v532
  %v572 = vpop.f32.mrf.mxu0
  %v573 = vadd.f32 %v526, %v572
  %574 = vmatmul.f32.gmra.mxu0 %v535
  %v575 = vpop.f32.mrf.mxu0
  %v576 = vadd.f32 %v526, %v575
  %577 = vmatmul.f32.gmra.mxu0 %v538
  %v578 = vpop.f32.mrf.mxu0
  %v579 = vadd.f32 %v526, %v578
  %580 = vmatmul.f32.gmra.mxu0 %v541
  %v581 = vpop.f32.mrf.mxu0
  %v582 = vadd.f32 %v526, %v581
  %583 = vmatmul.f32.gmra.mxu0 %v544
  %v584 = vpop.f32.mrf.mxu0
  %v585 = vadd.f32 %v526, %v584
  %586 = vmatmul.f32.gmra.mxu0 %v547
  %v587 = vpop.f32.mrf.mxu0
  %v588 = vadd.f32 %v526, %v587
  %589 = vmatmul.f32.gmra.mxu0 %v550
  %v590 = vpop.f32.mrf.mxu0
  %v591 = vadd.f32 %v526, %v590
  %592 = vdwg.mxu0
  %v593 = vmax.f32 %v570, 0.0
  %v594 = vmax.f32 %v573, 0.0
  %v595 = vmax.f32 %v576, 0.0
  %v596 = vmax.f32 %v579, 0.0
  %v597 = vmax.f32 %v582, 0.0
  %v598 = vmax.f32 %v585, 0.0
  %v599 = vmax.f32 %v588, 0.0
  %v600 = vmax.f32 %v591, 0.0
  %v601 = vld [vmem:[%s6] sm:$0xff]
  %v602 = vld [vmem:[%s6 + $0x8] sm:$0xff]
  %v603 = vld [vmem:[%s6 + $0x10] sm:$0xff]
  %v604 = vld [vmem:[%s6 + $0x18] sm:$0xff]
  %v605 = vld [vmem:[%s6 + $0x20] sm:$0xff]
  %v606 = vld [vmem:[%s6 + $0x28] sm:$0xff]
  %v607 = vld [vmem:[%s6 + $0x30] sm:$0xff]
  %v608 = vld [vmem:[%s6 + $0x38] sm:$0xff]
  %v609 = vld [vmem:[%s6 + $0x40] sm:$0xff]
  %v610 = vld [vmem:[%s6 + $0x48] sm:$0xff]
  %v611 = vld [vmem:[%s6 + $0x50] sm:$0xff]
  %v612 = vld [vmem:[%s6 + $0x58] sm:$0xff]
  %v613 = vld [vmem:[%s6 + $0x60] sm:$0xff]
  %v614 = vld [vmem:[%s6 + $0x68] sm:$0xff]
  %v615 = vld [vmem:[%s6 + $0x70] sm:$0xff]
  %v616 = vld [vmem:[%s6 + $0x78] sm:$0xff]
  %v617 = vld [vmem:[%s7] sm:$0x1]
  %v619 = vperm.slane %v617, 0
  %621 = vmatpush.msra.mxu0 %v616
  %622 = vmatpush.msra.mxu0 %v615
  %623 = vmatpush.msra.mxu0 %v614
  %624 = vmatpush.msra.mxu0 %v613
  %625 = vmatpush.msra.mxu0 %v612
  %626 = vmatpush.msra.mxu0 %v611
  %627 = vmatpush.msra.mxu0 %v610
  %628 = vmatpush.msra.mxu0 %v609
  %629 = vmatpush.msra.mxu0 %v608
  %630 = vmatpush.msra.mxu0 %v607
  %631 = vmatpush.msra.mxu0 %v606
  %632 = vmatpush.msra.mxu0 %v605
  %633 = vmatpush.msra.mxu0 %v604
  %634 = vmatpush.msra.mxu0 %v603
  %635 = vmatpush.msra.mxu0 %v602
  %636 = vmatpush.msra.mxu0 %v601
  %637 = vmatmul.f32.gmra.mxu0 %v593
  %v638 = vpop.f32.mrf.mxu0
  %v639 = vadd.f32 %v619, %v638
  %640 = vmatmul.f32.gmra.mxu0 %v594
  %v641 = vpop.f32.mrf.mxu0
  %v642 = vadd.f32 %v619, %v641
  %643 = vmatmul.f32.gmra.mxu0 %v595
  %v644 = vpop.f32.mrf.mxu0
  %v645 = vadd.f32 %v619, %v644
  %646 = vmatmul.f32.gmra.mxu0 %v596
  %v647 = vpop.f32.mrf.mxu0
  %v648 = vadd.f32 %v619, %v647
  %649 = vmatmul.f32.gmra.mxu0 %v597
  %v650 = vpop.f32.mrf.mxu0
  %v651 = vadd.f32 %v619, %v650
  %652 = vmatmul.f32.gmra.mxu0 %v598
  %v653 = vpop.f32.mrf.mxu0
  %v654 = vadd.f32 %v619, %v653
  %655 = vmatmul.f32.gmra.mxu0 %v599
  %v656 = vpop.f32.mrf.mxu0
  %v657 = vadd.f32 %v619, %v656
  %658 = vmatmul.f32.gmra.mxu0 %v600
  %v659 = vpop.f32.mrf.mxu0
  %v660 = vadd.f32 %v619, %v659
  %661 = vdwg.mxu0
  %662 = vst [vmem:[%s10] sm:$0xff] %v639
  %663 = vst [vmem:[%s10 + $0x8] sm:$0xff] %v642
  %664 = vst [vmem:[%s10 + $0x10] sm:$0xff] %v645
  %665 = vst [vmem:[%s10 + $0x18] sm:$0xff] %v648
  %666 = vst [vmem:[%s10 + $0x20] sm:$0xff] %v651
  %667 = vst [vmem:[%s10 + $0x28] sm:$0xff] %v654
  %668 = vst [vmem:[%s10 + $0x30] sm:$0xff] %v657
  %669 = vst [vmem:[%s10 + $0x38] sm:$0xff] %v660
  // Predicated region
  $region42: #{drq_net_forward.1} parent=0 // pred_check
    _
  $region43: #{drq_net_forward.1} parent=0 // pred_check_branch
    %671 = sbr.rel (0) target = $region45
  $region44: #{drq_net_forward.1} parent=0 // pred_region
    _
  $region45: #{drq_net_forward.1} parent=0 // pred_fallthru
    _
  // Predicated region
  $region46: #{drq_net_forward.1} parent=0 // pred_check
    _
  $region47: #{drq_net_forward.1} parent=0 // pred_check_branch
    %673 = sbr.rel (0) target = $region49
  $region48: #{drq_net_forward.1} parent=0 // pred_region
    _
  $region49: #{drq_net_forward.1} parent=0 // pred_fallthru
    _
  // Predicated region
  $region50: #{drq_net_forward.1} parent=0 // pred_check
    _
  $region51: #{drq_net_forward.1} parent=0 // pred_check_branch
    %675 = sbr.rel (0) target = $region53
  $region52: #{drq_net_forward.1} parent=0 // pred_region
    _
  $region53: #{drq_net_forward.1} parent=0 // pred_fallthru
    _
  // Predicated region
  $region54: #{drq_net_forward.1} parent=0 // pred_check
    _
  $region55: #{drq_net_forward.1} parent=0 // pred_check_branch
    %677 = sbr.rel (0) target = $region57
  $region56: #{drq_net_forward.1} parent=0 // pred_region
    _
  $region57: #{drq_net_forward.1} parent=0 // pred_fallthru
    _
  // Predicated region
  $region58: #{drq_net_forward.1} parent=0 // pred_check
    _
  $region59: #{drq_net_forward.1} parent=0 // pred_check_branch
    %679 = sbr.rel (0) target = $region61
  $region60: #{drq_net_forward.1} parent=0 // pred_region
    _
  $region61: #{drq_net_forward.1} parent=0 // pred_fallthru
    _
  // Predicated region
  $region62: #{drq_net_forward.1} parent=0 // pred_check
    _
  $region63: #{drq_net_forward.1} parent=0 // pred_check_branch
    %681 = sbr.rel (0) target = $region65
  $region64: #{drq_net_forward.1} parent=0 // pred_region
    _
  $region65: #{drq_net_forward.1} parent=0 // pred_fallthru
    _

</llo_original>
